<compile_context>
chip_gen: v7x
topology: tpu7x:2x2x1
jax: 0.10.0
libtpu: 0.0.40
codegen_flags: <defaults>
</compile_context>

<pallas_src>
import functools

import jax
import jax.numpy as jnp
import numpy as np
from jax.experimental import pallas as pl
from jax.experimental.pallas import tpu as pltpu


def _vmem_budget_bytes():
    """Per-chip scoped-VMEM budget: 3/4 of physical, capped at 48 MiB (v7x-safe)."""
    try:
        cap = int(pltpu.get_tpu_info().vmem_capacity_bytes)
    except Exception:  # query unavailable -> assume the smallest (v7x per-core)
        cap = 64 << 20
    return int(min((cap * 3) // 4, 48 << 20))


def _pick_layout(H, W):
    """Flatten (H, W) -> (R, L) with L a multiple of 128 when H*W allows it."""
    N = H * W
    cands = [l for l in range(128, 1025, 128) if N % l == 0]
    if not cands:
        return H, W                      # fall back to the original spatial layout
    good = [l for l in cands if (N // l) % 8 == 0]   # prefer R divisible by 8
    L = max(good) if good else max(cands)
    return N // L, L


def _pick_tile_rows(R, L, C, logit_isz, label_isz, budget):
    """Largest legal row-tile: fits the VMEM budget (double-buffered streams +
    partial-sum output), targets ~4 MiB per logit channel, divides R, and is a
    multiple of 8 (or the full extent)."""
    per_row = L * (C * logit_isz + label_isz)          # streamed bytes per row
    out_bytes = 2 * (4 * 8 * L * 4)                    # double-buffered partial sums
    headroom = 1 << 20
    avail = max(budget - out_bytes - headroom, 2 * per_row)
    max_rows_budget = max(avail // (2 * per_row), 1)
    max_rows_target = max((4 << 20) // (L * logit_isz), 1)
    limit = int(min(max_rows_budget, max_rows_target, R))
    if R % 8 == 0:
        cands = [tr for tr in range(8, R + 1, 8) if R % tr == 0 and tr <= limit]
        return max(cands) if cands else 8
    # R not a multiple of 8: only a full-extent row block is legal.
    return R


def _bdc_bce_kernel(logit_ref, y_ref, out_ref, *, channels):
    """One (1, C, TR, L) logit tile + (1, 1, TR, L) label tile per grid step.

    out_ref is the per-batch partial-sum block f32[1, 4, 8, L], used directly as
    the accumulator (resident in VMEM across the row-tile axis):
      q=0: sum(p*y), q=1: sum(p), q=2: sum(y), q=3: sum(bce)
    The final scalar reductions + loss combine happen in the JAX wrapper.
    """
    h = pl.program_id(1)

    @pl.when(h == 0)
    def _init():
        out_ref[...] = jnp.zeros_like(out_ref)

    # softmax over 2 channels reduces exactly to sigmoid of the logit difference;
    # the single-channel case uses the logit directly.  Cast to f32 first so
    # bf16 inputs lose no precision in the subtraction.
    if channels == 1:
        x = logit_ref[0, 0].astype(jnp.float32)
    else:
        x = logit_ref[0, 1].astype(jnp.float32) - logit_ref[0, 0].astype(jnp.float32)
    y = y_ref[0, 0].astype(jnp.float32)

    # Logits-space BCE (softplus form): 3 EUP pushes (exp, log1p, divide),
    # equivalent to PyTorch BCELoss(sigmoid(x), y) incl. the -100 log clamp.
    t = jnp.exp(-jnp.abs(x))                     # exp(-|x|)
    sp = jnp.maximum(x, 0.0) + jnp.log1p(t)      # softplus(x)
    log_p = jnp.maximum(x - sp, -100.0)          # log(sigmoid(x))
    log_1mp = jnp.maximum(-sp, -100.0)           # log(1 - sigmoid(x))
    r = 1.0 / (1.0 + t)
    p = jnp.where(x >= 0.0, r, t * r)            # sigmoid(x), stable
    bce = -(y * log_p + (1.0 - y) * log_1mp)

    TR, L = x.shape

    def accumulate(q, v):
        if TR % 8 == 0:
            # Partial in-tile reduction: add the TR/8 sublane-row vreg groups
            # (pure VALU adds, layout-preserving reshape), then one small RMW.
            part = jnp.sum(v.reshape(TR // 8, 8, L), axis=0)
        else:
            # Small/odd row tiles: reduce rows, place result in sublane row 0.
            row = jax.lax.broadcasted_iota(jnp.int32, (8, L), 0)
            colsum = jnp.sum(v, axis=0, keepdims=True)           # (1, L)
            part = jnp.where(row == 0, jnp.broadcast_to(colsum, (8, L)), 0.0)
        out_ref[0, q] += part

    accumulate(0, p * y)
    accumulate(1, p)
    accumulate(2, y)
    accumulate(3, bce)


def bdc_bce_loss(logit, labels):
    """logit: [B, C, H, W] (C<=2), labels: [B, 1, H, W] with values in {0,1}.

    Inputs may be bf16/f16 logits and int8/bool/f32 labels; everything is cast
    to f32 inside the kernel.
    """
    B, C, H, W = logit.shape
    assert C <= 2
    assert labels.shape == (B, 1, H, W)

    R, L = _pick_layout(H, W)
    logit2 = logit.reshape(B, C, R, L)          # free: contiguous reshape
    labels2 = labels.reshape(B, 1, R, L)

    budget = _vmem_budget_bytes()
    TR = _pick_tile_rows(R, L, C,
                         jnp.dtype(logit.dtype).itemsize,
                         jnp.dtype(labels.dtype).itemsize,
                         budget)
    grid = (B, R // TR)

    partials = pl.pallas_call(
        functools.partial(_bdc_bce_kernel, channels=C),
        out_shape=jax.ShapeDtypeStruct((B, 4, 8, L), jnp.float32),
        grid=grid,
        in_specs=[pl.BlockSpec((1, C, TR, L), lambda b, h: (b, 0, h, 0)),
                  pl.BlockSpec((1, 1, TR, L), lambda b, h: (b, 0, h, 0))],
        out_specs=pl.BlockSpec((1, 4, 8, L), lambda b, h: (b, 0, 0, 0)),
        compiler_params=pltpu.CompilerParams(
            dimension_semantics=("parallel", "arbitrary"),
            vmem_limit_bytes=budget),
    )(logit2, labels2)

    # Tiny final combine in plain JAX (per-batch lane-dense partial sums).
    sums = jnp.sum(partials, axis=(0, 2, 3))            # (4,)
    s_py, s_p, s_y, s_bce = sums[0], sums[1], sums[2], sums[3]
    inv_n = np.float32(1.0 / float(B * H * W))           # double-derived constant
    loss2 = s_bce * inv_n                                 # mean-reduced BCE
    loss1 = -(2.0 * s_py + 1e-4) / (s_p + s_y + 1e-4)     # soft dice
    return loss1 + loss2


def bdc_bce_reference(logit, labels):
    """Pure-JAX reference mirroring the PyTorch forward (ignore_index=None)."""
    B, C, H, W = logit.shape
    if C == 1:
        p = jax.nn.sigmoid(logit)[:, 0]
    else:
        p = jax.nn.softmax(logit, axis=1)[:, 1]
    y = labels.reshape(B, H, W).astype(jnp.float32)
    log_p = jnp.maximum(jnp.log(p), -100.0)
    log_1mp = jnp.maximum(jnp.log1p(-p), -100.0)
    loss2 = jnp.mean(-(y * log_p + (1.0 - y) * log_1mp))
    loss1 = -(2.0 * jnp.sum(p * y) + 1e-4) / (jnp.sum(p) + jnp.sum(y) + 1e-4)
    return loss1 + loss2


if __name__ == "__main__":
    key = jax.random.PRNGKey(0)
    k1, k2, k3 = jax.random.split(key, 3)

    # Two-channel (softmax) case.
    B, C, H, W = 2, 2, 16, 16
    logit2 = jax.random.normal(k1, (B, C, H, W), dtype=jnp.float32)
    labels = (jax.random.uniform(k2, (B, 1, H, W)) > 0.5).astype(jnp.float32)

    loss2c = jax.block_until_ready(bdc_bce_loss(logit2, labels))
    ref2c = jax.block_until_ready(bdc_bce_reference(logit2, labels))
    np.testing.assert_allclose(np.asarray(loss2c), np.asarray(ref2c),
                               rtol=1e-5, atol=1e-5)

    # Single-channel (sigmoid) case.
    logit1 = jax.random.normal(k3, (B, 1, H, W), dtype=jnp.float32)
    loss1c = jax.block_until_ready(bdc_bce_loss(logit1, labels))
    ref1c = jax.block_until_ready(bdc_bce_reference(logit1, labels))
    np.testing.assert_allclose(np.asarray(loss1c), np.asarray(ref1c),
                               rtol=1e-5, atol=1e-5)

    print("KERNEL_OK")
</pallas_src>

<mosaic_0001>
module attributes {stable_mosaic.version = 11 : i64} {
  func.func @_bdc_bce_kernel(%arg0: i32, %arg1: i32, %arg2: memref<1x2x1x256xf32, #tpu.memory_space<vmem>>, %arg3: memref<1x1x1x256xf32, #tpu.memory_space<vmem>>, %arg4: memref<1x4x8x256xf32, #tpu.memory_space<vmem>>) attributes {dimension_semantics = [#tpu.dimension_semantics<parallel>, #tpu.dimension_semantics<arbitrary>], iteration_bounds = array<i64: 2, 1>, scalar_prefetch = 0 : i64, scratch_operands = 0 : i64, tpu.core_type = #tpu.core_type<tc>, window_params = [{transform_indices = @transform_0, window_bounds = array<i64: 1, 2, 1, 256>}, {transform_indices = @transform_1, window_bounds = array<i64: 1, 1, 1, 256>}, {transform_indices = @transform_2, window_bounds = array<i64: 1, 4, 8, 256>}]} {
    %c0_i32 = arith.constant 0 : i32
    %0 = arith.cmpi eq, %arg1, %c0_i32 : i32
    %1 = arith.extui %0 : i1 to i32
    %c0_i32_0 = arith.constant 0 : i32
    %2 = arith.cmpi ne, %1, %c0_i32_0 : i32
    scf.if %2 {
      %cst_62 = arith.constant 0.000000e+00 : f32
      %101 = vector.broadcast %cst_62 : f32 to vector<1x4x8x256xf32>
      %c0_63 = arith.constant 0 : index
      %c0_64 = arith.constant 0 : index
      %c0_65 = arith.constant 0 : index
      %c0_66 = arith.constant 0 : index
      %102 = vector.load %arg4[%c0_63, %c0_64, %c0_65, %c0_66] : memref<1x4x8x256xf32, #tpu.memory_space<vmem>>, vector<1x4x8x256xf32>
      tpu.vector_store %arg4[%c0_63, %c0_64, %c0_65, %c0_66], %101 {strides = array<i32>} : memref<1x4x8x256xf32, #tpu.memory_space<vmem>>, vector<1x4x8x256xf32>,
    } else {
    }
    %c0 = arith.constant 0 : index
    %c1 = arith.constant 1 : index
    %c0_1 = arith.constant 0 : index
    %c0_2 = arith.constant 0 : index
    %3 = vector.load %arg2[%c0, %c1, %c0_1, %c0_2] : memref<1x2x1x256xf32, #tpu.memory_space<vmem>>, vector<1x1x1x256xf32>
    %4 = vector.shape_cast %3 : vector<1x1x1x256xf32> to vector<1x256xf32>
    %c0_3 = arith.constant 0 : index
    %c0_4 = arith.constant 0 : index
    %c0_5 = arith.constant 0 : index
    %c0_6 = arith.constant 0 : index
    %5 = vector.load %arg2[%c0_3, %c0_4, %c0_5, %c0_6] : memref<1x2x1x256xf32, #tpu.memory_space<vmem>>, vector<1x1x1x256xf32>
    %6 = vector.shape_cast %5 : vector<1x1x1x256xf32> to vector<1x256xf32>
    %7 = arith.subf %4, %6 : vector<1x256xf32>
    %c0_7 = arith.constant 0 : index
    %c0_8 = arith.constant 0 : index
    %c0_9 = arith.constant 0 : index
    %c0_10 = arith.constant 0 : index
    %8 = vector.load %arg3[%c0_7, %c0_8, %c0_9, %c0_10] : memref<1x1x1x256xf32, #tpu.memory_space<vmem>>, vector<1x1x1x256xf32>
    %9 = vector.shape_cast %8 : vector<1x1x1x256xf32> to vector<1x256xf32>
    %10 = math.absf %7 : vector<1x256xf32>
    %cst = arith.constant 0.000000e+00 : f32
    %11 = vector.broadcast %cst : f32 to vector<1x256xf32>
    %12 = arith.subf %11, %10 : vector<1x256xf32>
    %13 = math.exp %12 : vector<1x256xf32>
    %cst_11 = arith.constant 0.000000e+00 : f32
    %14 = vector.broadcast %cst_11 : f32 to vector<1x256xf32>
    %15 = arith.maximumf %7, %14 : vector<1x256xf32>
    %16 = math.log1p %13 : vector<1x256xf32>
    %17 = arith.addf %15, %16 : vector<1x256xf32>
    %18 = arith.subf %7, %17 : vector<1x256xf32>
    %cst_12 = arith.constant -1.000000e+02 : f32
    %19 = vector.broadcast %cst_12 : f32 to vector<1x256xf32>
    %20 = arith.maximumf %18, %19 : vector<1x256xf32>
    %cst_13 = arith.constant 0.000000e+00 : f32
    %21 = vector.broadcast %cst_13 : f32 to vector<1x256xf32>
    %22 = arith.subf %21, %17 : vector<1x256xf32>
    %cst_14 = arith.constant -1.000000e+02 : f32
    %23 = vector.broadcast %cst_14 : f32 to vector<1x256xf32>
    %24 = arith.maximumf %22, %23 : vector<1x256xf32>
    %cst_15 = arith.constant 1.000000e+00 : f32
    %25 = vector.broadcast %cst_15 : f32 to vector<1x256xf32>
    %26 = arith.addf %25, %13 : vector<1x256xf32>
    %cst_16 = arith.constant 1.000000e+00 : f32
    %27 = vector.broadcast %cst_16 : f32 to vector<1x256xf32>
    %28 = arith.divf %27, %26 : vector<1x256xf32>
    %cst_17 = arith.constant 0.000000e+00 : f32
    %29 = vector.broadcast %cst_17 : f32 to vector<1x256xf32>
    %30 = arith.cmpf oge, %7, %29 : vector<1x256xf32>
    %31 = arith.mulf %13, %28 : vector<1x256xf32>
    %32 = arith.select %30, %28, %31 : vector<1x256xi1>, vector<1x256xf32>
    %33 = arith.mulf %9, %20 : vector<1x256xf32>
    %cst_18 = arith.constant 1.000000e+00 : f32
    %34 = vector.broadcast %cst_18 : f32 to vector<1x256xf32>
    %35 = arith.subf %34, %9 : vector<1x256xf32>
    %36 = arith.mulf %35, %24 : vector<1x256xf32>
    %37 = arith.addf %33, %36 : vector<1x256xf32>
    %cst_19 = arith.constant 0.000000e+00 : f32
    %38 = vector.broadcast %cst_19 : f32 to vector<1x256xf32>
    %39 = arith.subf %38, %37 : vector<1x256xf32>
    %40 = arith.mulf %32, %9 : vector<1x256xf32>
    %41 = tpu.iota {dimensions = array<i32: 0>} : vector<8x256xi32>
    %cst_20 = arith.constant dense<0.000000e+00> : vector<256xf32>
    %42 = vector.multi_reduction <add>, %40, %cst_20 [0] : vector<1x256xf32> to vector<256xf32>
    %43 = vector.shape_cast %42 : vector<256xf32> to vector<1x256xf32>
    %c0_i32_21 = arith.constant 0 : i32
    %44 = vector.broadcast %c0_i32_21 : i32 to vector<8x256xi32>
    %45 = arith.cmpi eq, %41, %44 : vector<8x256xi32>
    %46 = vector.shape_cast %43 : vector<1x256xf32> to vector<1x256xf32>
    %47 = vector.broadcast %46 : vector<1x256xf32> to vector<8x256xf32>
    %cst_22 = arith.constant 0.000000e+00 : f32
    %48 = vector.broadcast %cst_22 : f32 to vector<8x256xf32>
    %49 = arith.select %45, %47, %48 : vector<8x256xi1>, vector<8x256xf32>
    %c0_23 = arith.constant 0 : index
    %c0_24 = arith.constant 0 : index
    %c0_25 = arith.constant 0 : index
    %c0_26 = arith.constant 0 : index
    %50 = vector.load %arg4[%c0_23, %c0_24, %c0_25, %c0_26] : memref<1x4x8x256xf32, #tpu.memory_space<vmem>>, vector<1x1x8x256xf32>
    %51 = vector.shape_cast %50 : vector<1x1x8x256xf32> to vector<8x256xf32>
    %52 = arith.addf %51, %49 : vector<8x256xf32>
    %c0_27 = arith.constant 0 : index
    %c0_28 = arith.constant 0 : index
    %c0_29 = arith.constant 0 : index
    %c0_30 = arith.constant 0 : index
    %53 = vector.load %arg4[%c0_27, %c0_28, %c0_29, %c0_30] : memref<1x4x8x256xf32, #tpu.memory_space<vmem>>, vector<1x1x8x256xf32>
    %54 = vector.shape_cast %53 : vector<1x1x8x256xf32> to vector<8x256xf32>
    %55 = vector.shape_cast %52 : vector<8x256xf32> to vector<1x1x8x256xf32>
    tpu.vector_store %arg4[%c0_27, %c0_28, %c0_29, %c0_30], %55 {strides = array<i32>} : memref<1x4x8x256xf32, #tpu.memory_space<vmem>>, vector<1x1x8x256xf32>,
    %56 = tpu.iota {dimensions = array<i32: 0>} : vector<8x256xi32>
    %cst_31 = arith.constant dense<0.000000e+00> : vector<256xf32>
    %57 = vector.multi_reduction <add>, %32, %cst_31 [0] : vector<1x256xf32> to vector<256xf32>
    %58 = vector.shape_cast %57 : vector<256xf32> to vector<1x256xf32>
    %c0_i32_32 = arith.constant 0 : i32
    %59 = vector.broadcast %c0_i32_32 : i32 to vector<8x256xi32>
    %60 = arith.cmpi eq, %56, %59 : vector<8x256xi32>
    %61 = vector.shape_cast %58 : vector<1x256xf32> to vector<1x256xf32>
    %62 = vector.broadcast %61 : vector<1x256xf32> to vector<8x256xf32>
    %cst_33 = arith.constant 0.000000e+00 : f32
    %63 = vector.broadcast %cst_33 : f32 to vector<8x256xf32>
    %64 = arith.select %60, %62, %63 : vector<8x256xi1>, vector<8x256xf32>
    %c0_34 = arith.constant 0 : index
    %c1_35 = arith.constant 1 : index
    %c0_36 = arith.constant 0 : index
    %c0_37 = arith.constant 0 : index
    %65 = vector.load %arg4[%c0_34, %c1_35, %c0_36, %c0_37] : memref<1x4x8x256xf32, #tpu.memory_space<vmem>>, vector<1x1x8x256xf32>
    %66 = vector.shape_cast %65 : vector<1x1x8x256xf32> to vector<8x256xf32>
    %67 = arith.addf %66, %64 : vector<8x256xf32>
    %c0_38 = arith.constant 0 : index
    %c1_39 = arith.constant 1 : index
    %c0_40 = arith.constant 0 : index
    %c0_41 = arith.constant 0 : index
    %68 = vector.load %arg4[%c0_38, %c1_39, %c0_40, %c0_41] : memref<1x4x8x256xf32, #tpu.memory_space<vmem>>, vector<1x1x8x256xf32>
    %69 = vector.shape_cast %68 : vector<1x1x8x256xf32> to vector<8x256xf32>
    %70 = vector.shape_cast %67 : vector<8x256xf32> to vector<1x1x8x256xf32>
    tpu.vector_store %arg4[%c0_38, %c1_39, %c0_40, %c0_41], %70 {strides = array<i32>} : memref<1x4x8x256xf32, #tpu.memory_space<vmem>>, vector<1x1x8x256xf32>,
    %71 = tpu.iota {dimensions = array<i32: 0>} : vector<8x256xi32>
    %cst_42 = arith.constant dense<0.000000e+00> : vector<256xf32>
    %72 = vector.multi_reduction <add>, %9, %cst_42 [0] : vector<1x256xf32> to vector<256xf32>
    %73 = vector.shape_cast %72 : vector<256xf32> to vector<1x256xf32>
    %c0_i32_43 = arith.constant 0 : i32
    %74 = vector.broadcast %c0_i32_43 : i32 to vector<8x256xi32>
    %75 = arith.cmpi eq, %71, %74 : vector<8x256xi32>
    %76 = vector.shape_cast %73 : vector<1x256xf32> to vector<1x256xf32>
    %77 = vector.broadcast %76 : vector<1x256xf32> to vector<8x256xf32>
    %cst_44 = arith.constant 0.000000e+00 : f32
    %78 = vector.broadcast %cst_44 : f32 to vector<8x256xf32>
    %79 = arith.select %75, %77, %78 : vector<8x256xi1>, vector<8x256xf32>
    %c0_45 = arith.constant 0 : index
    %c2 = arith.constant 2 : index
    %c0_46 = arith.constant 0 : index
    %c0_47 = arith.constant 0 : index
    %80 = vector.load %arg4[%c0_45, %c2, %c0_46, %c0_47] : memref<1x4x8x256xf32, #tpu.memory_space<vmem>>, vector<1x1x8x256xf32>
    %81 = vector.shape_cast %80 : vector<1x1x8x256xf32> to vector<8x256xf32>
    %82 = arith.addf %81, %79 : vector<8x256xf32>
    %c0_48 = arith.constant 0 : index
    %c2_49 = arith.constant 2 : index
    %c0_50 = arith.constant 0 : index
    %c0_51 = arith.constant 0 : index
    %83 = vector.load %arg4[%c0_48, %c2_49, %c0_50, %c0_51] : memref<1x4x8x256xf32, #tpu.memory_space<vmem>>, vector<1x1x8x256xf32>
    %84 = vector.shape_cast %83 : vector<1x1x8x256xf32> to vector<8x256xf32>
    %85 = vector.shape_cast %82 : vector<8x256xf32> to vector<1x1x8x256xf32>
    tpu.vector_store %arg4[%c0_48, %c2_49, %c0_50, %c0_51], %85 {strides = array<i32>} : memref<1x4x8x256xf32, #tpu.memory_space<vmem>>, vector<1x1x8x256xf32>,
    %86 = tpu.iota {dimensions = array<i32: 0>} : vector<8x256xi32>
    %cst_52 = arith.constant dense<0.000000e+00> : vector<256xf32>
    %87 = vector.multi_reduction <add>, %39, %cst_52 [0] : vector<1x256xf32> to vector<256xf32>
    %88 = vector.shape_cast %87 : vector<256xf32> to vector<1x256xf32>
    %c0_i32_53 = arith.constant 0 : i32
    %89 = vector.broadcast %c0_i32_53 : i32 to vector<8x256xi32>
    %90 = arith.cmpi eq, %86, %89 : vector<8x256xi32>
    %91 = vector.shape_cast %88 : vector<1x256xf32> to vector<1x256xf32>
    %92 = vector.broadcast %91 : vector<1x256xf32> to vector<8x256xf32>
    %cst_54 = arith.constant 0.000000e+00 : f32
    %93 = vector.broadcast %cst_54 : f32 to vector<8x256xf32>
    %94 = arith.select %90, %92, %93 : vector<8x256xi1>, vector<8x256xf32>
    %c0_55 = arith.constant 0 : index
    %c3 = arith.constant 3 : index
    %c0_56 = arith.constant 0 : index
    %c0_57 = arith.constant 0 : index
    %95 = vector.load %arg4[%c0_55, %c3, %c0_56, %c0_57] : memref<1x4x8x256xf32, #tpu.memory_space<vmem>>, vector<1x1x8x256xf32>
    %96 = vector.shape_cast %95 : vector<1x1x8x256xf32> to vector<8x256xf32>
    %97 = arith.addf %96, %94 : vector<8x256xf32>
    %c0_58 = arith.constant 0 : index
    %c3_59 = arith.constant 3 : index
    %c0_60 = arith.constant 0 : index
    %c0_61 = arith.constant 0 : index
    %98 = vector.load %arg4[%c0_58, %c3_59, %c0_60, %c0_61] : memref<1x4x8x256xf32, #tpu.memory_space<vmem>>, vector<1x1x8x256xf32>
    %99 = vector.shape_cast %98 : vector<1x1x8x256xf32> to vector<8x256xf32>
    %100 = vector.shape_cast %97 : vector<8x256xf32> to vector<1x1x8x256xf32>
    tpu.vector_store %arg4[%c0_58, %c3_59, %c0_60, %c0_61], %100 {strides = array<i32>} : memref<1x4x8x256xf32, #tpu.memory_space<vmem>>, vector<1x1x8x256xf32>,
    return
  }
  func.func @transform_0(%arg0: i32, %arg1: i32) -> (i32, i32, i32, i32) {
    %c0_i32 = arith.constant 0 : i32
    %c0_i32_0 = arith.constant 0 : i32
    %c0_i32_1 = arith.constant 0 : i32
    return %arg0, %c0_i32, %arg1, %c0_i32_0 : i32, i32, i32, i32
  }
  func.func @transform_1(%arg0: i32, %arg1: i32) -> (i32, i32, i32, i32) {
    %c0_i32 = arith.constant 0 : i32
    %c0_i32_0 = arith.constant 0 : i32
    %c0_i32_1 = arith.constant 0 : i32
    return %arg0, %c0_i32, %arg1, %c0_i32_0 : i32, i32, i32, i32
  }
  func.func @transform_2(%arg0: i32, %arg1: i32) -> (i32, i32, i32, i32) {
    %c0_i32 = arith.constant 0 : i32
    %c0_i32_0 = arith.constant 0 : i32
    %c0_i32_1 = arith.constant 0 : i32
    %c0_i32_2 = arith.constant 0 : i32
    return %arg0, %c0_i32, %c0_i32_0, %c0_i32_1 : i32, i32, i32, i32
  }
}

</mosaic_0001>

<llo_original>
// kernel: tpu_custom_call.1
$region0: #{tpu_custom_call.1}
  #allocation0 [shape = 'u32[]', space=smem, size = 0x4, offset = 0x4, fixed_abs, tag = 'smem constant byte address 0x4 - core index']
  #allocation1 [shape = 'u32[144,128]{1,0:T(1,128)}', space=vmem, size = 0x12000, scoped, tag = 'internal scratch']
  %s0 = inlined_call_operand.hbm [shape: f32[2,2,1,256], index: 0, kind: input, shape index: {}]
  %s1 = inlined_call_operand.hbm [shape: f32[2,1,1,256], index: 1, kind: input, shape index: {}]
  %s2 = inlined_call_operand.hbm [shape: f32[2,4,8,256], index: 2, kind: output, shape index: {}]
  %s3 = sld [smem:[#allocation0]]
  $region53: #{tpu_custom_call.1} parent=0
    _
  %s5 = ssub.s32 1, %s3
  %s6 = scalar_select 0, %s5, %s3
  $region1: #{tpu_custom_call.1} parent=0
    #allocation2 [shape = 'u8[4096]{0}', space=vmem, size = 0x1000, scoped, tag = 'input window, operand 0']
    #allocation3 [shape = 's32[2]{0}', space=sflag, size = 0x8, scoped, tag = 'scoped memory for tpu_custom_call.1']
    #allocation4 [shape = 's32[2]{0}', space=sflag, size = 0x8, scoped, tag = 'scoped memory for tpu_custom_call.1']
    #allocation5 [shape = 'u8[2048]{0}', space=vmem, size = 0x800, scoped, tag = 'input window, operand 1']
    #allocation6 [shape = 's32[2]{0}', space=sflag, size = 0x8, scoped, tag = 'scoped memory for tpu_custom_call.1']
    #allocation7 [shape = 'u8[65536]{0}', space=vmem, size = 0x10000, scoped, tag = 'output window, operand 0']
    %7 = vsyncpa [#allocation3], 0
    %s8 = scalar_lea.sflag [#allocation3], 1
    %9 = vsyncpa %s8, 0
    %10 = vsyncpa [#allocation6], 0
    %s11 = scalar_lea.sflag [#allocation6], 1
    %12 = vsyncpa %s11, 0
    %13 = vsyncpa [#allocation4], 0
    %s14 = scalar_lea.sflag [#allocation4], 1
    %15 = vsyncpa %s14, 0
    loop: start=0, step=1, limit=4
    $region2: #{tpu_custom_call.1} parent=1 // loop_pre_header
      _
    $region3: #{tpu_custom_call.1} parent=1 // loop_header
      %s17 = sphi 0, %s21
      %p18 = scmp.ge.s32.totalorder %s17, 4
      %s24 = sphi 0, %s36
      %s25 = sphi 0, %s32
      %s26 = sphi 0, %s24
      %s27 = sphi 0, %s25
      %s28 = sphi 0, %s26
      %s29 = sphi 0, %s27
      %s41 = sphi 0, %s43
      %s44 = sphi 0, %s41
      %s45 = sphi 0, %s44
      %s61 = sphi 0, %s45
      %s69 = sphi 0, %s71
      %s72 = sphi 0, %s69
      %s73 = sphi 0, %s72
      %s89 = sphi 0, %s73
      %s95 = sphi 0, %s97
      %s98 = sphi 0, %s95
      %s99 = sphi 0, %s98
      %s115 = sphi 0, %s99
    $region4: #{tpu_custom_call.1} parent=1 // loop_header_branch
      %20 = sbr.rel (%p18) target = $region8
    $region5: #{tpu_custom_call.1} parent=1 // loop_body
      %s22 = ssub.s32 %s17, 1
      %s23 = ssub.s32 %s17, 2
      %s30 = sadd.s32 1, %s25
      %p31 = scmp.ge.s32.totalorder %s30, 1
      %s32 = scalar_select %p31, 0, %s30
      %s33 = sadd.s32 1, %s24
      %s34 = scalar_select %p31, %s33, %s24
      %p35 = scmp.ge.s32.totalorder %s34, 2
      %s36 = scalar_select %p35, 0, %s34
      %s37 = ssub.s32 %s24, %s36
      %s38 = ssub.s32 %s25, %s32
      %s39 = sor.u32 %s37, %s38
      %p40 = scmp.eq.s32.totalorder %s39, 0
      %s42 = sadd.s32 %s41, 1
      %s43 = scalar_select %p40, %s41, %s42
      %p46 = pneg %p40
      %p47 = scmp.eq.s32.totalorder %s17, 1
      %p48 = por %p46, %p47
      %p49 = scmp.ne.s32.totalorder %s41, %s44
      %p50 = scmp.eq.s32.totalorder %s17, 0
      %p51 = por %p49, %p50
      %p52 = scmp.ne.s32.totalorder %s41, %s44
      %p53 = scmp.eq.s32.totalorder %s22, 1
      %p54 = por %p52, %p53
      %p55 = scmp.ne.s32.totalorder %s44, %s45
      %p56 = scmp.eq.s32.totalorder %s22, 0
      %p57 = por %p55, %p56
      %p58 = scmp.ne.s32.totalorder %s44, %s45
      %p59 = scmp.eq.s32.totalorder %s23, 1
      %p60 = por %p58, %p59
      %p62 = scmp.ne.s32.totalorder %s45, %s61
      %p63 = scmp.eq.s32.totalorder %s23, 0
      %p64 = por %p62, %p63
      %s65 = ssub.s32 %s24, %s36
      %s66 = ssub.s32 %s25, %s32
      %s67 = sor.u32 %s65, %s66
      %p68 = scmp.eq.s32.totalorder %s67, 0
      %s70 = sadd.s32 %s69, 1
      %s71 = scalar_select %p68, %s69, %s70
      %p74 = pneg %p68
      %p75 = scmp.eq.s32.totalorder %s17, 1
      %p76 = por %p74, %p75
      %p77 = scmp.ne.s32.totalorder %s69, %s72
      %p78 = scmp.eq.s32.totalorder %s17, 0
      %p79 = por %p77, %p78
      %p80 = scmp.ne.s32.totalorder %s69, %s72
      %p81 = scmp.eq.s32.totalorder %s22, 1
      %p82 = por %p80, %p81
      %p83 = scmp.ne.s32.totalorder %s72, %s73
      %p84 = scmp.eq.s32.totalorder %s22, 0
      %p85 = por %p83, %p84
      %p86 = scmp.ne.s32.totalorder %s72, %s73
      %p87 = scmp.eq.s32.totalorder %s23, 1
      %p88 = por %p86, %p87
      %p90 = scmp.ne.s32.totalorder %s73, %s89
      %p91 = scmp.eq.s32.totalorder %s23, 0
      %p92 = por %p90, %p91
      %s93 = ssub.s32 %s24, %s36
      %p94 = scmp.eq.s32.totalorder %s93, 0
      %s96 = sadd.s32 %s95, 1
      %s97 = scalar_select %p94, %s95, %s96
      %p100 = pneg %p94
      %p101 = scmp.eq.s32.totalorder %s17, 1
      %p102 = por %p100, %p101
      %p103 = scmp.ne.s32.totalorder %s95, %s98
      %p104 = scmp.eq.s32.totalorder %s17, 0
      %p105 = por %p103, %p104
      %p106 = scmp.ne.s32.totalorder %s95, %s98
      %p107 = scmp.eq.s32.totalorder %s22, 1
      %p108 = por %p106, %p107
      %p109 = scmp.ne.s32.totalorder %s98, %s99
      %p110 = scmp.eq.s32.totalorder %s22, 0
      %p111 = por %p109, %p110
      %p112 = scmp.ne.s32.totalorder %s98, %s99
      %p113 = scmp.eq.s32.totalorder %s23, 1
      %p114 = por %p112, %p113
      %p116 = scmp.ne.s32.totalorder %s99, %s115
      %p117 = scmp.eq.s32.totalorder %s23, 0
      %p118 = por %p116, %p117
      %p119 = scmp.le.s32.totalorder 1, %s17
      %p120 = scmp.lt.s32.totalorder %s17, 3
      %p121 = pnand %p119, %p120
      %p122 = pneg %p121
      // Predicated region
      $region9: #{tpu_custom_call.1} parent=5 // pred_check
        _
      $region10: #{tpu_custom_call.1} parent=5 // pred_check_branch
        %124 = sbr.rel (%p121) target = $region12
      $region11: #{tpu_custom_call.1} parent=5 // pred_region
        %s125 = ssub.s32 %s17, 1
      $region12: #{tpu_custom_call.1} parent=5 // pred_fallthru
        _
      %p126 = scmp.lt.s32.totalorder %s17, 2
      // Predicated region
      $region13: #{tpu_custom_call.1} parent=5 // pred_check
        %p127 = pneg %p126
      $region14: #{tpu_custom_call.1} parent=5 // pred_check_branch
        %129 = sbr.rel (%p127) target = $region16
      $region15: #{tpu_custom_call.1} parent=5 // pred_region
        // Predicated region
        $region17: #{tpu_custom_call.1} parent=15 // pred_check
          %p130 = pneg %p51
        $region18: #{tpu_custom_call.1} parent=15 // pred_check_branch
          %132 = sbr.rel (%p130) target = $region20
        $region19: #{tpu_custom_call.1} parent=15 // pred_region
          %s133 = sand.u32 %s41, 1
          %s134 = scalar_lea.sflag [#allocation3], %s133
          %s135 = sand.u32 %s41, 1
          %s136 = smul.addr %s135, 4
          %s137 = scalar_lea.vmem [#allocation2], %s136
          %s139 = ssub.s32 64, 64
          %140 = vsyncadd %s134, %s139
          %s141 = smul.addr %s25, 2
          %s142 = smul.addr %s24, 4
          %s143 = sadd.s32 %s141, %s142
          %s144 = smul.addr %s143, 16
          %s145 = scalar_lea.hbm %s0, %s144
          %s146 = sshll.u32 %s137, 4
          %s147 = int_to_ptr.vmem [resolvable:$true] %s146
          %152 = dma.hbm_to_vmem [thread:$0]  %s145, 64, %s147, %s134, 32, 32, 2
        $region20: #{tpu_custom_call.1} parent=15 // pred_fallthru
          _
        // Predicated region
        $region21: #{tpu_custom_call.1} parent=15 // pred_check
          %p153 = pneg %p79
        $region22: #{tpu_custom_call.1} parent=15 // pred_check_branch
          %155 = sbr.rel (%p153) target = $region24
        $region23: #{tpu_custom_call.1} parent=15 // pred_region
          %s156 = sand.u32 %s69, 1
          %s157 = scalar_lea.sflag [#allocation6], %s156
          %s158 = sand.u32 %s69, 1
          %s159 = smul.addr %s158, 2
          %s160 = scalar_lea.vmem [#allocation5], %s159
          %s162 = ssub.s32 32, 32
          %163 = vsyncadd %s157, %s162
          %s164 = smul.addr %s25, 2
          %s165 = smul.addr %s24, 2
          %s166 = sadd.s32 %s164, %s165
          %s167 = smul.addr %s166, 16
          %s168 = scalar_lea.hbm %s1, %s167
          %s170 = sshll.u32 %s160, 4
          %s171 = int_to_ptr.vmem [resolvable:$true] %s170
          %173 = dma.hbm_to_vmem [thread:$0]  %s168, 32, %s171, %s157
        $region24: #{tpu_custom_call.1} parent=15 // pred_fallthru
          _
      $region16: #{tpu_custom_call.1} parent=5 // pred_fallthru
        _
      %p174 = scmp.le.s32.totalorder 1, %s17
      %p175 = scmp.lt.s32.totalorder %s17, 3
      %p176 = pnand %p174, %p175
      %p177 = pneg %p176
      // Predicated region
      $region25: #{tpu_custom_call.1} parent=5 // pred_check
        _
      $region26: #{tpu_custom_call.1} parent=5 // pred_check_branch
        %179 = sbr.rel (%p176) target = $region28
      $region27: #{tpu_custom_call.1} parent=5 // pred_region
        %s180 = ssub.s32 %s17, 1
        %s181 = sand.u32 %s44, 1
        %s182 = scalar_lea.sflag [#allocation3], %s181
        %s183 = sand.u32 %s44, 1
        %s184 = smul.addr %s183, 4
        %s185 = scalar_lea.vmem [#allocation2], %s184
        // Predicated region
        $region29: #{tpu_custom_call.1} parent=27 // pred_check
          %p186 = pneg %p57
        $region30: #{tpu_custom_call.1} parent=27 // pred_check_branch
          %188 = sbr.rel (%p186) target = $region32
        $region31: #{tpu_custom_call.1} parent=27 // pred_region
          %189 = dma.done %s182, 64
        $region32: #{tpu_custom_call.1} parent=27 // pred_fallthru
          _
        %s190 = sand.u32 %s72, 1
        %s191 = scalar_lea.sflag [#allocation6], %s190
        %s192 = sand.u32 %s72, 1
        %s193 = smul.addr %s192, 2
        %s194 = scalar_lea.vmem [#allocation5], %s193
        // Predicated region
        $region33: #{tpu_custom_call.1} parent=27 // pred_check
          %p195 = pneg %p85
        $region34: #{tpu_custom_call.1} parent=27 // pred_check_branch
          %197 = sbr.rel (%p195) target = $region36
        $region35: #{tpu_custom_call.1} parent=27 // pred_region
          %198 = dma.done %s191, 32
        $region36: #{tpu_custom_call.1} parent=27 // pred_fallthru
          _
        %s199 = sand.u32 %s44, 1
        %s200 = scalar_lea.sflag [#allocation3], %s199
        %s201 = sand.u32 %s44, 1
        %s202 = smul.addr %s201, 4
        %s203 = scalar_lea.vmem [#allocation2], %s202
        %p204 = pneg %p57
        %p205 = pneg %p54
        %s206 = sand.u32 %s72, 1
        %s207 = scalar_lea.sflag [#allocation6], %s206
        %s208 = sand.u32 %s72, 1
        %s209 = smul.addr %s208, 2
        %s210 = scalar_lea.vmem [#allocation5], %s209
        %p211 = pneg %p85
        %p212 = pneg %p82
        %p213 = pneg %p111
        %p214 = pneg %p108
        %s215 = sand.u32 %s98, 1
        %s216 = scalar_lea.sflag [#allocation4], %s215
        %s217 = sand.u32 %s98, 1
        %s218 = smul.addr %s217, 64
        %s219 = scalar_lea.vmem [#allocation7], %s218
        %p220 = scmp.eq.s32.totalorder %s27, 0
        // Predicated region
        $region37: #{tpu_custom_call.1} parent=27 // pred_check
          %p221 = pneg %p220
        $region38: #{tpu_custom_call.1} parent=27 // pred_check_branch
          %223 = sbr.rel (%p221) target = $region40
        $region39: #{tpu_custom_call.1} parent=27 // pred_region
          %224 = vst [vmem:[%s219] sm:$0xff] 0.0
          %225 = vst [vmem:[%s219 + $0x8] sm:$0xff] 0.0
          %226 = vst [vmem:[%s219 + $0x10] sm:$0xff] 0.0
          %227 = vst [vmem:[%s219 + $0x18] sm:$0xff] 0.0
          %228 = vst [vmem:[%s219 + $0x20] sm:$0xff] 0.0
          %229 = vst [vmem:[%s219 + $0x28] sm:$0xff] 0.0
          %230 = vst [vmem:[%s219 + $0x30] sm:$0xff] 0.0
          %231 = vst [vmem:[%s219 + $0x38] sm:$0xff] 0.0
        $region40: #{tpu_custom_call.1} parent=27 // pred_fallthru
          _
        %s232 = scalar_lea.vmem %s185, 2 [#allocation2]
        %v233 = vld [vmem:[%s232] sm:$0x3]
        %v234 = vld [vmem:[%s185] sm:$0x3]
        %v235 = vsub.f32 %v233, %v234
        %v236 = vld [vmem:[%s194] sm:$0x3]
        %v237 = vand.u32 2147483647, %v235
        %v238 = vsub.f32 0.0, %v237
        %v239 = vmul.f32 %v238, 1.442695
        %v240 = vpow.pop %v239
        %v241 = vmax.f32 %v235, 0.0
        %v242 = vadd.f32 %v240, 1.0
        %v243 = vlog2.pop %v242
        %v244 = vmul.f32 %v243, 0.6931472
        %v245 = vmul.f32 -0.5, %v240
        %v246 = vadd.f32 %v245, 1.0
        %v247 = vmul.f32 %v246, %v240
        %v248 = vand.u32 2147483647, %v240
        %vm249 = vcmp.lt.f32.partialorder %v248, 0.0004427343
        %v250 = vsel %vm249, %v247, %v244
        %v251 = vadd.f32 %v241, %v250
        %v252 = vsub.f32 %v235, %v251
        %v253 = vmax.f32 %v252, -100.0
        %v254 = vsub.f32 0.0, %v251
        %v255 = vmax.f32 %v254, -100.0
        %v256 = vadd.f32 %v240, 1.0
        %v257 = vrcp.pop %v256
        %v258 = vmul.f32 1.0, %v257
        %vm259 = vcmp.ge.f32.partialorder %v235, 0.0
        %v260 = vmul.f32 %v240, %v258
        %v261 = vsel %vm259, %v258, %v260
        %v262 = vmul.f32 %v236, %v253
        %v263 = vsub.f32 1.0, %v236
        %v264 = vmul.f32 %v263, %v255
        %v265 = vadd.f32 %v262, %v264
        %v266 = vsub.f32 0.0, %v265
        %v267 = vmul.f32 %v261, %v236
        %v268 = vlaneseq
        %v269 = vshrl.u32 %v268, 7
        %v270 = vadd.f32 %v267, 0.0
        %vm271 = vcmp.eq.s32.totalorder %v269, 0
        %v273 = vlaneseq
        %v274 = vshrl.u32 %v273, 7
        %v275 = vsub.s32 0, %v274
        %v276 = vrot.slane %v270, %v275
        %v277 = vlaneseq
        %v278 = vshrl.u32 %v277, 7
        %v279 = vsub.s32 1, %v278
        %v280 = vrot.slane %v270, %v279
        %v283 = vsel %vm271, %v276, 0.0
        %v284 = vsel %vm271, %v280, 0.0
        %v285 = vld [vmem:[%s219] sm:$0xff]
        %v286 = vld [vmem:[%s219 + $0x8] sm:$0xff]
        %v287 = vadd.f32 %v285, %v283
        %v288 = vadd.f32 %v286, %v284
        %289 = vst [vmem:[%s219] sm:$0xff] %v287
        %290 = vst [vmem:[%s219 + $0x8] sm:$0xff] %v288
        %v291 = vadd.f32 %v261, 0.0
        %v293 = vlaneseq
        %v294 = vshrl.u32 %v293, 7
        %v295 = vsub.s32 0, %v294
        %v296 = vrot.slane %v291, %v295
        %v297 = vlaneseq
        %v298 = vshrl.u32 %v297, 7
        %v299 = vsub.s32 1, %v298
        %v300 = vrot.slane %v291, %v299
        %v303 = vsel %vm271, %v296, 0.0
        %v304 = vsel %vm271, %v300, 0.0
        %s305 = scalar_lea.vmem %s219, 16 [#allocation7]
        %v306 = vld [vmem:[%s305] sm:$0xff]
        %v307 = vld [vmem:[%s305 + $0x8] sm:$0xff]
        %v308 = vadd.f32 %v306, %v303
        %v309 = vadd.f32 %v307, %v304
        %310 = vst [vmem:[%s305] sm:$0xff] %v308
        %311 = vst [vmem:[%s305 + $0x8] sm:$0xff] %v309
        %v312 = vadd.f32 %v236, 0.0
        %v314 = vlaneseq
        %v315 = vshrl.u32 %v314, 7
        %v316 = vsub.s32 0, %v315
        %v317 = vrot.slane %v312, %v316
        %v318 = vlaneseq
        %v319 = vshrl.u32 %v318, 7
        %v320 = vsub.s32 1, %v319
        %v321 = vrot.slane %v312, %v320
        %v324 = vsel %vm271, %v317, 0.0
        %v325 = vsel %vm271, %v321, 0.0
        %s326 = scalar_lea.vmem %s219, 32 [#allocation7]
        %v327 = vld [vmem:[%s326] sm:$0xff]
        %v328 = vld [vmem:[%s326 + $0x8] sm:$0xff]
        %v329 = vadd.f32 %v327, %v324
        %v330 = vadd.f32 %v328, %v325
        %331 = vst [vmem:[%s326] sm:$0xff] %v329
        %332 = vst [vmem:[%s326 + $0x8] sm:$0xff] %v330
        %v333 = vadd.f32 %v266, 0.0
        %v335 = vlaneseq
        %v336 = vshrl.u32 %v335, 7
        %v337 = vsub.s32 0, %v336
        %v338 = vrot.slane %v333, %v337
        %v339 = vlaneseq
        %v340 = vshrl.u32 %v339, 7
        %v341 = vsub.s32 1, %v340
        %v342 = vrot.slane %v333, %v341
        %v345 = vsel %vm271, %v338, 0.0
        %v346 = vsel %vm271, %v342, 0.0
        %s347 = scalar_lea.vmem %s219, 48 [#allocation7]
        %v348 = vld [vmem:[%s347] sm:$0xff]
        %v349 = vld [vmem:[%s347 + $0x8] sm:$0xff]
        %v350 = vadd.f32 %v348, %v345
        %v351 = vadd.f32 %v349, %v346
        %352 = vst [vmem:[%s347] sm:$0xff] %v350
        %353 = vst [vmem:[%s347 + $0x8] sm:$0xff] %v351
        %s354 = sand.u32 %s98, 1
        %s355 = scalar_lea.sflag [#allocation4], %s354
        %s356 = sand.u32 %s98, 1
        %s357 = smul.addr %s356, 64
        %s358 = scalar_lea.vmem [#allocation7], %s357
        // Predicated region
        $region41: #{tpu_custom_call.1} parent=27 // pred_check
          %p359 = pneg %p108
        $region42: #{tpu_custom_call.1} parent=27 // pred_check_branch
          %361 = sbr.rel (%p359) target = $region44
        $region43: #{tpu_custom_call.1} parent=27 // pred_region
          %s363 = ssub.s32 1024, 1024
          %364 = vsyncadd %s355, %s363
          %s365 = smul.addr %s26, 8
          %s366 = smul.addr %s365, 128
          %s367 = scalar_lea.hbm %s2, %s366
          %s368 = sshll.u32 %s358, 4
          %s369 = int_to_ptr.vmem [resolvable:$true] %s368
          %374 = dma.vmem_to_hbm [thread:$0]  %s369, 1024, %s367, %s355, 256, 256, 16
        $region44: #{tpu_custom_call.1} parent=27 // pred_fallthru
          _
      $region28: #{tpu_custom_call.1} parent=5 // pred_fallthru
        _
      %p375 = scmp.le.s32.totalorder 2, %s17
      // Predicated region
      $region45: #{tpu_custom_call.1} parent=5 // pred_check
        %p376 = pneg %p375
      $region46: #{tpu_custom_call.1} parent=5 // pred_check_branch
        %378 = sbr.rel (%p376) target = $region48
      $region47: #{tpu_custom_call.1} parent=5 // pred_region
        %s379 = ssub.s32 %s17, 2
        // Predicated region
        $region49: #{tpu_custom_call.1} parent=47 // pred_check
          %p380 = pneg %p114
        $region50: #{tpu_custom_call.1} parent=47 // pred_check_branch
          %382 = sbr.rel (%p380) target = $region52
        $region51: #{tpu_custom_call.1} parent=47 // pred_region
          %s383 = sand.u32 %s99, 1
          %s384 = scalar_lea.sflag [#allocation4], %s383
          %s385 = sand.u32 %s99, 1
          %s386 = smul.addr %s385, 64
          %s387 = scalar_lea.vmem [#allocation7], %s386
          %388 = dma.done %s384, 1024
        $region52: #{tpu_custom_call.1} parent=47 // pred_fallthru
          _
      $region48: #{tpu_custom_call.1} parent=5 // pred_fallthru
        _
    $region6: #{tpu_custom_call.1} parent=1 // loop_footer
      %s21 = sadd.s32 1, %s17
    $region7: #{tpu_custom_call.1} parent=1 // loop_footer_branch
      %16 = sbr.rel target = $region3
    $region8: #{tpu_custom_call.1} parent=1 // loop_exit
      _
    %389 = vsyncpa [#allocation3], 1
    %s390 = scalar_lea.sflag [#allocation3], 1
    %391 = vsyncpa %s390, 1
    %392 = vsyncpa [#allocation6], 1
    %s393 = scalar_lea.sflag [#allocation6], 1
    %394 = vsyncpa %s393, 1
    %395 = vsyncpa [#allocation4], 1
    %s396 = scalar_lea.sflag [#allocation4], 1
    %397 = vsyncpa %s396, 1

</llo_original>
